<compile_context>
chip_gen: v7x
topology: tpu7x:2x2x1
jax: 0.10.0
libtpu: 0.0.40
codegen_flags: <defaults>
</compile_context>

<pallas_src>
import functools

import jax
import jax.numpy as jnp
from jax import lax
from jax.experimental import pallas as pl
from jax.experimental.pallas import tpu as pltpu


def _eresidual_block_kernel(x_ref, w1_ref, b1_ref, w2_ref, b2_ref,
                            w3_ref, b3_ref, o_ref, patch_ref, *, H, W):
    # x_ref     : (1, C, H*W)   input tile — channels on sublanes, pixels on lanes
    # w1_ref    : (C, 9*C)      conv1 weights, K ordered (ky, kx, cin)
    # b1_ref    : (C, 1)
    # w2_ref    : (C, 9*C)      conv2 weights
    # b2_ref    : (C, 1)
    # w3_ref    : (C, C)        1x1 conv weights
    # b3_ref    : (C, 1)
    # o_ref     : (1, C, H*W)   output tile
    # patch_ref : VMEM (9*C, H*W) f32  im2col scratch (fully rewritten per conv)
    C = x_ref.shape[1]
    HW = x_ref.shape[2]

    # --- per-tap boundary masks, computed once (hoisted out of both convs) ---
    pos = lax.broadcasted_iota(jnp.int32, (1, HW), 1)
    if (W & (W - 1)) == 0:
        col = jnp.bitwise_and(pos, W - 1)          # pos % W  (power-of-2 fast path)
    else:
        col = pos % W                              # TODO(synk): non-pow2 widths use vector rem
    row_ge1 = pos >= W                             # row >= 1
    row_le_hm2 = pos < (H - 1) * W                 # row <= H-2
    col_ge1 = col >= 1                             # col >= 1
    col_le_wm2 = col <= W - 2                      # col <= W-2

    tap_masks = []
    for ky in range(3):
        for kx in range(3):
            dy, dx = ky - 1, kx - 1
            conds = []
            if dy < 0:
                conds.append(row_ge1)
            if dy > 0:
                conds.append(row_le_hm2)
            if dx < 0:
                conds.append(col_ge1)
            if dx > 0:
                conds.append(col_le_wm2)
            m = None
            for c in conds:
                m = c if m is None else jnp.logical_and(m, c)
            if m is not None:
                m = jnp.broadcast_to(m, (C, HW))   # broadcast hoisted, reused by both convs
            tap_masks.append(m)

    def conv3x3(v, w_ref, b_ref):
        # v: (C, HW) activation resident in vregs.
        # Build the im2col patch (9*C, HW) with lane rotations + masks, then
        # one MXU matmul with K = 9*C.
        for ky in range(3):
            for kx in range(3):
                k = ky * 3 + kx
                off = (ky - 1) * W + (kx - 1)      # flattened source offset
                tap = pltpu.roll(v, (-off) % HW, 1) if off != 0 else v
                if tap_masks[k] is not None:
                    tap = jnp.where(tap_masks[k], tap, 0.0)
                patch_ref[k * C:(k + 1) * C, :] = tap
        out = jnp.dot(w_ref[...], patch_ref[...],
                      preferred_element_type=jnp.float32)
        return out + b_ref[...]                    # (C, HW) + (C, 1)

    x = x_ref[0]                                   # (C, HW) — reused for residual
    h = jnp.maximum(conv3x3(x, w1_ref, b1_ref), 0.0)
    h = jnp.maximum(conv3x3(h, w2_ref, b2_ref), 0.0)
    y = jnp.dot(w3_ref[...], h, preferred_element_type=jnp.float32) + b3_ref[...]
    o_ref[0] = jnp.maximum(y + x, 0.0)             # residual add + final ReLU


def eresidual_block(x_nchw, params):
    """Forward pass of EResidualBlock. Input/output are NCHW like PyTorch."""
    N, C, H, W = x_nchw.shape
    Cout = params["w1"].shape[0]
    assert C == Cout, "residual add requires in_channels == out_channels"
    HW = H * W

    # Free (contiguous) reshape — no transpose, data stays NCHW-ordered.
    x_flat = x_nchw.reshape(N, C, HW)

    # Tiny static weight prep: OIHW -> (O, KH, KW, I) -> (O, 9*I), matching the
    # (tap-major, channel-minor) K ordering of the im2col patch.
    w1m = jnp.transpose(params["w1"], (0, 2, 3, 1)).reshape(C, 9 * C)
    w2m = jnp.transpose(params["w2"], (0, 2, 3, 1)).reshape(C, 9 * C)
    w3m = params["w3"].reshape(C, C)               # (O, I, 1, 1) -> (O, I)
    b1 = params["b1"].reshape(C, 1)
    b2 = params["b2"].reshape(C, 1)
    b3 = params["b3"].reshape(C, 1)

    kernel = functools.partial(_eresidual_block_kernel, H=H, W=W)

    out = pl.pallas_call(
        kernel,
        out_shape=jax.ShapeDtypeStruct((N, C, HW), jnp.float32),
        grid=(N,),
        in_specs=[
            pl.BlockSpec((1, C, HW), lambda n: (n, 0, 0)),
            pl.BlockSpec((C, 9 * C), lambda n: (0, 0)),
            pl.BlockSpec((C, 1), lambda n: (0, 0)),
            pl.BlockSpec((C, 9 * C), lambda n: (0, 0)),
            pl.BlockSpec((C, 1), lambda n: (0, 0)),
            pl.BlockSpec((C, C), lambda n: (0, 0)),
            pl.BlockSpec((C, 1), lambda n: (0, 0)),
        ],
        out_specs=pl.BlockSpec((1, C, HW), lambda n: (n, 0, 0)),
        scratch_shapes=[
            pltpu.VMEM((9 * C, HW), jnp.float32),   # im2col patch (reused by both convs)
        ],
        compiler_params=pltpu.CompilerParams(
            dimension_semantics=("parallel",)),
    )(x_flat, w1m, b1, w2m, b2, w3m, b3)

    return out.reshape(N, C, H, W)                 # free reshape back to NCHW


def init_params(key, in_channels, out_channels):
    """Deterministic synthetic parameters, PyTorch nn.Conv2d layouts (OIHW)."""
    k1, k2, k3, k4, k5, k6 = jax.random.split(key, 6)
    s1 = 1.0 / (in_channels * 9.0) ** 0.5
    s2 = 1.0 / (out_channels * 9.0) ** 0.5
    s3 = 1.0 / (out_channels * 1.0) ** 0.5
    return {
        "w1": jax.random.uniform(k1, (out_channels, in_channels, 3, 3),
                                 jnp.float32, -s1, s1),
        "b1": jax.random.uniform(k2, (out_channels,), jnp.float32, -s1, s1),
        "w2": jax.random.uniform(k3, (out_channels, out_channels, 3, 3),
                                 jnp.float32, -s2, s2),
        "b2": jax.random.uniform(k4, (out_channels,), jnp.float32, -s2, s2),
        "w3": jax.random.uniform(k5, (out_channels, out_channels, 1, 1),
                                 jnp.float32, -s3, s3),
        "b3": jax.random.uniform(k6, (out_channels,), jnp.float32, -s3, s3),
    }


def _reference(x_nchw, params):
    """Pure-JAX reference matching the PyTorch module (one ReLU after add)."""
    dn = ("NCHW", "OIHW", "NCHW")
    h = lax.conv_general_dilated(x_nchw, params["w1"], (1, 1), "SAME",
                                 dimension_numbers=dn)
    h = jnp.maximum(h + params["b1"][None, :, None, None], 0.0)
    h = lax.conv_general_dilated(h, params["w2"], (1, 1), "SAME",
                                 dimension_numbers=dn)
    h = jnp.maximum(h + params["b2"][None, :, None, None], 0.0)
    y = lax.conv_general_dilated(h, params["w3"], (1, 1), "SAME",
                                 dimension_numbers=dn)
    y = y + params["b3"][None, :, None, None]
    return jnp.maximum(y + x_nchw, 0.0)


if __name__ == "__main__":
    key = jax.random.PRNGKey(0)
    kx, kp = jax.random.split(key)

    batch, channels, spatial = 2, 4, 16   # in_channels == out_channels == 4
    x = jax.random.normal(kx, (batch, channels, spatial, spatial), jnp.float32)
    params = init_params(kp, channels, channels)

    fwd = jax.jit(eresidual_block)
    out = jax.block_until_ready(fwd(x, params))

    ref = jax.block_until_ready(_reference(x, params))
    assert out.shape == x.shape
    assert jnp.allclose(out, ref, atol=1e-4, rtol=1e-4), "mismatch vs reference"

    print("KERNEL_OK")
</pallas_src>

<mosaic_0001>
module attributes {stable_mosaic.version = 11 : i64} {
  func.func @_eresidual_block_kernel(%arg0: i32, %arg1: memref<1x4x256xf32, #tpu.memory_space<vmem>>, %arg2: memref<4x36xf32, #tpu.memory_space<vmem>>, %arg3: memref<4x1xf32, #tpu.memory_space<vmem>>, %arg4: memref<4x36xf32, #tpu.memory_space<vmem>>, %arg5: memref<4x1xf32, #tpu.memory_space<vmem>>, %arg6: memref<4x4xf32, #tpu.memory_space<vmem>>, %arg7: memref<4x1xf32, #tpu.memory_space<vmem>>, %arg8: memref<1x4x256xf32, #tpu.memory_space<vmem>>, %arg9: memref<36x256xf32, #tpu.memory_space<vmem>>) attributes {dimension_semantics = [#tpu.dimension_semantics<parallel>], iteration_bounds = array<i64: 2>, scalar_prefetch = 0 : i64, scratch_operands = 1 : i64, tpu.core_type = #tpu.core_type<tc>, window_params = [{transform_indices = @transform_0, window_bounds = array<i64: 1, 4, 256>}, {pipeline_mode = #tpu.pipeline_mode<synchronous>, transform_indices = @transform_1, window_bounds = array<i64: 4, 36>}, {pipeline_mode = #tpu.pipeline_mode<synchronous>, transform_indices = @transform_2, window_bounds = array<i64: 4, 1>}, {pipeline_mode = #tpu.pipeline_mode<synchronous>, transform_indices = @transform_3, window_bounds = array<i64: 4, 36>}, {pipeline_mode = #tpu.pipeline_mode<synchronous>, transform_indices = @transform_4, window_bounds = array<i64: 4, 1>}, {pipeline_mode = #tpu.pipeline_mode<synchronous>, transform_indices = @transform_5, window_bounds = array<i64: 4, 4>}, {pipeline_mode = #tpu.pipeline_mode<synchronous>, transform_indices = @transform_6, window_bounds = array<i64: 4, 1>}, {transform_indices = @transform_7, window_bounds = array<i64: 1, 4, 256>}]} {
    %0 = tpu.iota {dimensions = array<i32: 1>} : vector<1x256xi32>
    %c15_i32 = arith.constant 15 : i32
    %1 = vector.broadcast %c15_i32 : i32 to vector<1x256xi32>
    %2 = arith.andi %0, %1 : vector<1x256xi32>
    %c16_i32 = arith.constant 16 : i32
    %3 = vector.broadcast %c16_i32 : i32 to vector<1x256xi32>
    %4 = arith.cmpi sge, %0, %3 : vector<1x256xi32>
    %c240_i32 = arith.constant 240 : i32
    %5 = vector.broadcast %c240_i32 : i32 to vector<1x256xi32>
    %6 = arith.cmpi slt, %0, %5 : vector<1x256xi32>
    %c1_i32 = arith.constant 1 : i32
    %7 = vector.broadcast %c1_i32 : i32 to vector<1x256xi32>
    %8 = arith.cmpi sge, %2, %7 : vector<1x256xi32>
    %c14_i32 = arith.constant 14 : i32
    %9 = vector.broadcast %c14_i32 : i32 to vector<1x256xi32>
    %10 = arith.cmpi sle, %2, %9 : vector<1x256xi32>
    %11 = arith.andi %4, %8 : vector<1x256xi1>
    %12 = vector.shape_cast %11 : vector<1x256xi1> to vector<1x256xi1>
    %13 = vector.broadcast %12 : vector<1x256xi1> to vector<4x256xi1>
    %14 = vector.shape_cast %4 : vector<1x256xi1> to vector<1x256xi1>
    %15 = vector.broadcast %14 : vector<1x256xi1> to vector<4x256xi1>
    %16 = arith.andi %4, %10 : vector<1x256xi1>
    %17 = vector.shape_cast %16 : vector<1x256xi1> to vector<1x256xi1>
    %18 = vector.broadcast %17 : vector<1x256xi1> to vector<4x256xi1>
    %19 = vector.shape_cast %8 : vector<1x256xi1> to vector<1x256xi1>
    %20 = vector.broadcast %19 : vector<1x256xi1> to vector<4x256xi1>
    %21 = vector.shape_cast %10 : vector<1x256xi1> to vector<1x256xi1>
    %22 = vector.broadcast %21 : vector<1x256xi1> to vector<4x256xi1>
    %23 = arith.andi %6, %8 : vector<1x256xi1>
    %24 = vector.shape_cast %23 : vector<1x256xi1> to vector<1x256xi1>
    %25 = vector.broadcast %24 : vector<1x256xi1> to vector<4x256xi1>
    %26 = vector.shape_cast %6 : vector<1x256xi1> to vector<1x256xi1>
    %27 = vector.broadcast %26 : vector<1x256xi1> to vector<4x256xi1>
    %28 = arith.andi %6, %10 : vector<1x256xi1>
    %29 = vector.shape_cast %28 : vector<1x256xi1> to vector<1x256xi1>
    %30 = vector.broadcast %29 : vector<1x256xi1> to vector<4x256xi1>
    %c0 = arith.constant 0 : index
    %c0_0 = arith.constant 0 : index
    %c0_1 = arith.constant 0 : index
    %31 = vector.load %arg1[%c0, %c0_0, %c0_1] : memref<1x4x256xf32, #tpu.memory_space<vmem>>, vector<1x4x256xf32>
    %32 = vector.shape_cast %31 : vector<1x4x256xf32> to vector<4x256xf32>
    %c17_i32 = arith.constant 17 : i32
    %33 = tpu.dynamic_rotate %32 by %c17_i32 dim 1 : vector<4x256xf32>, i32 -> vector<4x256xf32>
    %cst = arith.constant 0.000000e+00 : f32
    %34 = vector.broadcast %cst : f32 to vector<4x256xf32>
    %35 = arith.select %13, %33, %34 : vector<4x256xi1>, vector<4x256xf32>
    %c0_2 = arith.constant 0 : index
    %c0_3 = arith.constant 0 : index
    %36 = vector.load %arg9[%c0_2, %c0_3] : memref<36x256xf32, #tpu.memory_space<vmem>>, vector<4x256xf32>
    tpu.vector_store %arg9[%c0_2, %c0_3], %35 {strides = array<i32>} : memref<36x256xf32, #tpu.memory_space<vmem>>, vector<4x256xf32>,
    %c16_i32_4 = arith.constant 16 : i32
    %37 = tpu.dynamic_rotate %32 by %c16_i32_4 dim 1 : vector<4x256xf32>, i32 -> vector<4x256xf32>
    %cst_5 = arith.constant 0.000000e+00 : f32
    %38 = vector.broadcast %cst_5 : f32 to vector<4x256xf32>
    %39 = arith.select %15, %37, %38 : vector<4x256xi1>, vector<4x256xf32>
    %c4 = arith.constant 4 : index
    %c0_6 = arith.constant 0 : index
    %40 = vector.load %arg9[%c4, %c0_6] : memref<36x256xf32, #tpu.memory_space<vmem>>, vector<4x256xf32>
    tpu.vector_store %arg9[%c4, %c0_6], %39 {strides = array<i32>} : memref<36x256xf32, #tpu.memory_space<vmem>>, vector<4x256xf32>,
    %c15_i32_7 = arith.constant 15 : i32
    %41 = tpu.dynamic_rotate %32 by %c15_i32_7 dim 1 : vector<4x256xf32>, i32 -> vector<4x256xf32>
    %cst_8 = arith.constant 0.000000e+00 : f32
    %42 = vector.broadcast %cst_8 : f32 to vector<4x256xf32>
    %43 = arith.select %18, %41, %42 : vector<4x256xi1>, vector<4x256xf32>
    %c8 = arith.constant 8 : index
    %c0_9 = arith.constant 0 : index
    %44 = vector.load %arg9[%c8, %c0_9] : memref<36x256xf32, #tpu.memory_space<vmem>>, vector<4x256xf32>
    tpu.vector_store %arg9[%c8, %c0_9], %43 {strides = array<i32>} : memref<36x256xf32, #tpu.memory_space<vmem>>, vector<4x256xf32>,
    %c1_i32_10 = arith.constant 1 : i32
    %45 = tpu.dynamic_rotate %32 by %c1_i32_10 dim 1 : vector<4x256xf32>, i32 -> vector<4x256xf32>
    %cst_11 = arith.constant 0.000000e+00 : f32
    %46 = vector.broadcast %cst_11 : f32 to vector<4x256xf32>
    %47 = arith.select %20, %45, %46 : vector<4x256xi1>, vector<4x256xf32>
    %c12 = arith.constant 12 : index
    %c0_12 = arith.constant 0 : index
    %48 = vector.load %arg9[%c12, %c0_12] : memref<36x256xf32, #tpu.memory_space<vmem>>, vector<4x256xf32>
    tpu.vector_store %arg9[%c12, %c0_12], %47 {strides = array<i32>} : memref<36x256xf32, #tpu.memory_space<vmem>>, vector<4x256xf32>,
    %c16 = arith.constant 16 : index
    %c0_13 = arith.constant 0 : index
    %49 = vector.load %arg9[%c16, %c0_13] : memref<36x256xf32, #tpu.memory_space<vmem>>, vector<4x256xf32>
    tpu.vector_store %arg9[%c16, %c0_13], %32 {strides = array<i32>} : memref<36x256xf32, #tpu.memory_space<vmem>>, vector<4x256xf32>,
    %c255_i32 = arith.constant 255 : i32
    %50 = tpu.dynamic_rotate %32 by %c255_i32 dim 1 : vector<4x256xf32>, i32 -> vector<4x256xf32>
    %cst_14 = arith.constant 0.000000e+00 : f32
    %51 = vector.broadcast %cst_14 : f32 to vector<4x256xf32>
    %52 = arith.select %22, %50, %51 : vector<4x256xi1>, vector<4x256xf32>
    %c20 = arith.constant 20 : index
    %c0_15 = arith.constant 0 : index
    %53 = vector.load %arg9[%c20, %c0_15] : memref<36x256xf32, #tpu.memory_space<vmem>>, vector<4x256xf32>
    tpu.vector_store %arg9[%c20, %c0_15], %52 {strides = array<i32>} : memref<36x256xf32, #tpu.memory_space<vmem>>, vector<4x256xf32>,
    %c241_i32 = arith.constant 241 : i32
    %54 = tpu.dynamic_rotate %32 by %c241_i32 dim 1 : vector<4x256xf32>, i32 -> vector<4x256xf32>
    %cst_16 = arith.constant 0.000000e+00 : f32
    %55 = vector.broadcast %cst_16 : f32 to vector<4x256xf32>
    %56 = arith.select %25, %54, %55 : vector<4x256xi1>, vector<4x256xf32>
    %c24 = arith.constant 24 : index
    %c0_17 = arith.constant 0 : index
    %57 = vector.load %arg9[%c24, %c0_17] : memref<36x256xf32, #tpu.memory_space<vmem>>, vector<4x256xf32>
    tpu.vector_store %arg9[%c24, %c0_17], %56 {strides = array<i32>} : memref<36x256xf32, #tpu.memory_space<vmem>>, vector<4x256xf32>,
    %c240_i32_18 = arith.constant 240 : i32
    %58 = tpu.dynamic_rotate %32 by %c240_i32_18 dim 1 : vector<4x256xf32>, i32 -> vector<4x256xf32>
    %cst_19 = arith.constant 0.000000e+00 : f32
    %59 = vector.broadcast %cst_19 : f32 to vector<4x256xf32>
    %60 = arith.select %27, %58, %59 : vector<4x256xi1>, vector<4x256xf32>
    %c28 = arith.constant 28 : index
    %c0_20 = arith.constant 0 : index
    %61 = vector.load %arg9[%c28, %c0_20] : memref<36x256xf32, #tpu.memory_space<vmem>>, vector<4x256xf32>
    tpu.vector_store %arg9[%c28, %c0_20], %60 {strides = array<i32>} : memref<36x256xf32, #tpu.memory_space<vmem>>, vector<4x256xf32>,
    %c239_i32 = arith.constant 239 : i32
    %62 = tpu.dynamic_rotate %32 by %c239_i32 dim 1 : vector<4x256xf32>, i32 -> vector<4x256xf32>
    %cst_21 = arith.constant 0.000000e+00 : f32
    %63 = vector.broadcast %cst_21 : f32 to vector<4x256xf32>
    %64 = arith.select %30, %62, %63 : vector<4x256xi1>, vector<4x256xf32>
    %c32 = arith.constant 32 : index
    %c0_22 = arith.constant 0 : index
    %65 = vector.load %arg9[%c32, %c0_22] : memref<36x256xf32, #tpu.memory_space<vmem>>, vector<4x256xf32>
    tpu.vector_store %arg9[%c32, %c0_22], %64 {strides = array<i32>} : memref<36x256xf32, #tpu.memory_space<vmem>>, vector<4x256xf32>,
    %c0_23 = arith.constant 0 : index
    %c0_24 = arith.constant 0 : index
    %66 = vector.load %arg2[%c0_23, %c0_24] : memref<4x36xf32, #tpu.memory_space<vmem>>, vector<4x36xf32>
    %c0_25 = arith.constant 0 : index
    %c0_26 = arith.constant 0 : index
    %67 = vector.load %arg9[%c0_25, %c0_26] : memref<36x256xf32, #tpu.memory_space<vmem>>, vector<36x256xf32>
    %cst_27 = arith.constant dense<0.000000e+00> : vector<4x256xf32>
    %68 = tpu.matmul %66, %67, %cst_27 {dimension_numbers = #tpu.dot_dimension_numbers<[1], [0], [0], [1], [0, 0, 1, 1], [], []>} : vector<4x36xf32>, vector<36x256xf32>, vector<4x256xf32> -> vector<4x256xf32>
    %c0_28 = arith.constant 0 : index
    %c0_29 = arith.constant 0 : index
    %69 = vector.load %arg3[%c0_28, %c0_29] : memref<4x1xf32, #tpu.memory_space<vmem>>, vector<4x1xf32>
    %70 = vector.broadcast %69 : vector<4x1xf32> to vector<4x256xf32>
    %71 = arith.addf %68, %70 : vector<4x256xf32>
    %cst_30 = arith.constant 0.000000e+00 : f32
    %72 = vector.broadcast %cst_30 : f32 to vector<4x256xf32>
    %73 = arith.maximumf %71, %72 : vector<4x256xf32>
    %c17_i32_31 = arith.constant 17 : i32
    %74 = tpu.dynamic_rotate %73 by %c17_i32_31 dim 1 : vector<4x256xf32>, i32 -> vector<4x256xf32>
    %cst_32 = arith.constant 0.000000e+00 : f32
    %75 = vector.broadcast %cst_32 : f32 to vector<4x256xf32>
    %76 = arith.select %13, %74, %75 : vector<4x256xi1>, vector<4x256xf32>
    %c0_33 = arith.constant 0 : index
    %c0_34 = arith.constant 0 : index
    %77 = vector.load %arg9[%c0_33, %c0_34] : memref<36x256xf32, #tpu.memory_space<vmem>>, vector<4x256xf32>
    tpu.vector_store %arg9[%c0_33, %c0_34], %76 {strides = array<i32>} : memref<36x256xf32, #tpu.memory_space<vmem>>, vector<4x256xf32>,
    %c16_i32_35 = arith.constant 16 : i32
    %78 = tpu.dynamic_rotate %73 by %c16_i32_35 dim 1 : vector<4x256xf32>, i32 -> vector<4x256xf32>
    %cst_36 = arith.constant 0.000000e+00 : f32
    %79 = vector.broadcast %cst_36 : f32 to vector<4x256xf32>
    %80 = arith.select %15, %78, %79 : vector<4x256xi1>, vector<4x256xf32>
    %c4_37 = arith.constant 4 : index
    %c0_38 = arith.constant 0 : index
    %81 = vector.load %arg9[%c4_37, %c0_38] : memref<36x256xf32, #tpu.memory_space<vmem>>, vector<4x256xf32>
    tpu.vector_store %arg9[%c4_37, %c0_38], %80 {strides = array<i32>} : memref<36x256xf32, #tpu.memory_space<vmem>>, vector<4x256xf32>,
    %c15_i32_39 = arith.constant 15 : i32
    %82 = tpu.dynamic_rotate %73 by %c15_i32_39 dim 1 : vector<4x256xf32>, i32 -> vector<4x256xf32>
    %cst_40 = arith.constant 0.000000e+00 : f32
    %83 = vector.broadcast %cst_40 : f32 to vector<4x256xf32>
    %84 = arith.select %18, %82, %83 : vector<4x256xi1>, vector<4x256xf32>
    %c8_41 = arith.constant 8 : index
    %c0_42 = arith.constant 0 : index
    %85 = vector.load %arg9[%c8_41, %c0_42] : memref<36x256xf32, #tpu.memory_space<vmem>>, vector<4x256xf32>
    tpu.vector_store %arg9[%c8_41, %c0_42], %84 {strides = array<i32>} : memref<36x256xf32, #tpu.memory_space<vmem>>, vector<4x256xf32>,
    %c1_i32_43 = arith.constant 1 : i32
    %86 = tpu.dynamic_rotate %73 by %c1_i32_43 dim 1 : vector<4x256xf32>, i32 -> vector<4x256xf32>
    %cst_44 = arith.constant 0.000000e+00 : f32
    %87 = vector.broadcast %cst_44 : f32 to vector<4x256xf32>
    %88 = arith.select %20, %86, %87 : vector<4x256xi1>, vector<4x256xf32>
    %c12_45 = arith.constant 12 : index
    %c0_46 = arith.constant 0 : index
    %89 = vector.load %arg9[%c12_45, %c0_46] : memref<36x256xf32, #tpu.memory_space<vmem>>, vector<4x256xf32>
    tpu.vector_store %arg9[%c12_45, %c0_46], %88 {strides = array<i32>} : memref<36x256xf32, #tpu.memory_space<vmem>>, vector<4x256xf32>,
    %c16_47 = arith.constant 16 : index
    %c0_48 = arith.constant 0 : index
    %90 = vector.load %arg9[%c16_47, %c0_48] : memref<36x256xf32, #tpu.memory_space<vmem>>, vector<4x256xf32>
    tpu.vector_store %arg9[%c16_47, %c0_48], %73 {strides = array<i32>} : memref<36x256xf32, #tpu.memory_space<vmem>>, vector<4x256xf32>,
    %c255_i32_49 = arith.constant 255 : i32
    %91 = tpu.dynamic_rotate %73 by %c255_i32_49 dim 1 : vector<4x256xf32>, i32 -> vector<4x256xf32>
    %cst_50 = arith.constant 0.000000e+00 : f32
    %92 = vector.broadcast %cst_50 : f32 to vector<4x256xf32>
    %93 = arith.select %22, %91, %92 : vector<4x256xi1>, vector<4x256xf32>
    %c20_51 = arith.constant 20 : index
    %c0_52 = arith.constant 0 : index
    %94 = vector.load %arg9[%c20_51, %c0_52] : memref<36x256xf32, #tpu.memory_space<vmem>>, vector<4x256xf32>
    tpu.vector_store %arg9[%c20_51, %c0_52], %93 {strides = array<i32>} : memref<36x256xf32, #tpu.memory_space<vmem>>, vector<4x256xf32>,
    %c241_i32_53 = arith.constant 241 : i32
    %95 = tpu.dynamic_rotate %73 by %c241_i32_53 dim 1 : vector<4x256xf32>, i32 -> vector<4x256xf32>
    %cst_54 = arith.constant 0.000000e+00 : f32
    %96 = vector.broadcast %cst_54 : f32 to vector<4x256xf32>
    %97 = arith.select %25, %95, %96 : vector<4x256xi1>, vector<4x256xf32>
    %c24_55 = arith.constant 24 : index
    %c0_56 = arith.constant 0 : index
    %98 = vector.load %arg9[%c24_55, %c0_56] : memref<36x256xf32, #tpu.memory_space<vmem>>, vector<4x256xf32>
    tpu.vector_store %arg9[%c24_55, %c0_56], %97 {strides = array<i32>} : memref<36x256xf32, #tpu.memory_space<vmem>>, vector<4x256xf32>,
    %c240_i32_57 = arith.constant 240 : i32
    %99 = tpu.dynamic_rotate %73 by %c240_i32_57 dim 1 : vector<4x256xf32>, i32 -> vector<4x256xf32>
    %cst_58 = arith.constant 0.000000e+00 : f32
    %100 = vector.broadcast %cst_58 : f32 to vector<4x256xf32>
    %101 = arith.select %27, %99, %100 : vector<4x256xi1>, vector<4x256xf32>
    %c28_59 = arith.constant 28 : index
    %c0_60 = arith.constant 0 : index
    %102 = vector.load %arg9[%c28_59, %c0_60] : memref<36x256xf32, #tpu.memory_space<vmem>>, vector<4x256xf32>
    tpu.vector_store %arg9[%c28_59, %c0_60], %101 {strides = array<i32>} : memref<36x256xf32, #tpu.memory_space<vmem>>, vector<4x256xf32>,
    %c239_i32_61 = arith.constant 239 : i32
    %103 = tpu.dynamic_rotate %73 by %c239_i32_61 dim 1 : vector<4x256xf32>, i32 -> vector<4x256xf32>
    %cst_62 = arith.constant 0.000000e+00 : f32
    %104 = vector.broadcast %cst_62 : f32 to vector<4x256xf32>
    %105 = arith.select %30, %103, %104 : vector<4x256xi1>, vector<4x256xf32>
    %c32_63 = arith.constant 32 : index
    %c0_64 = arith.constant 0 : index
    %106 = vector.load %arg9[%c32_63, %c0_64] : memref<36x256xf32, #tpu.memory_space<vmem>>, vector<4x256xf32>
    tpu.vector_store %arg9[%c32_63, %c0_64], %105 {strides = array<i32>} : memref<36x256xf32, #tpu.memory_space<vmem>>, vector<4x256xf32>,
    %c0_65 = arith.constant 0 : index
    %c0_66 = arith.constant 0 : index
    %107 = vector.load %arg4[%c0_65, %c0_66] : memref<4x36xf32, #tpu.memory_space<vmem>>, vector<4x36xf32>
    %c0_67 = arith.constant 0 : index
    %c0_68 = arith.constant 0 : index
    %108 = vector.load %arg9[%c0_67, %c0_68] : memref<36x256xf32, #tpu.memory_space<vmem>>, vector<36x256xf32>
    %cst_69 = arith.constant dense<0.000000e+00> : vector<4x256xf32>
    %109 = tpu.matmul %107, %108, %cst_69 {dimension_numbers = #tpu.dot_dimension_numbers<[1], [0], [0], [1], [0, 0, 1, 1], [], []>} : vector<4x36xf32>, vector<36x256xf32>, vector<4x256xf32> -> vector<4x256xf32>
    %c0_70 = arith.constant 0 : index
    %c0_71 = arith.constant 0 : index
    %110 = vector.load %arg5[%c0_70, %c0_71] : memref<4x1xf32, #tpu.memory_space<vmem>>, vector<4x1xf32>
    %111 = vector.broadcast %110 : vector<4x1xf32> to vector<4x256xf32>
    %112 = arith.addf %109, %111 : vector<4x256xf32>
    %cst_72 = arith.constant 0.000000e+00 : f32
    %113 = vector.broadcast %cst_72 : f32 to vector<4x256xf32>
    %114 = arith.maximumf %112, %113 : vector<4x256xf32>
    %c0_73 = arith.constant 0 : index
    %c0_74 = arith.constant 0 : index
    %115 = vector.load %arg6[%c0_73, %c0_74] : memref<4x4xf32, #tpu.memory_space<vmem>>, vector<4x4xf32>
    %cst_75 = arith.constant dense<0.000000e+00> : vector<4x256xf32>
    %116 = tpu.matmul %115, %114, %cst_75 {dimension_numbers = #tpu.dot_dimension_numbers<[1], [0], [0], [1], [0, 0, 1, 1], [], []>} : vector<4x4xf32>, vector<4x256xf32>, vector<4x256xf32> -> vector<4x256xf32>
    %c0_76 = arith.constant 0 : index
    %c0_77 = arith.constant 0 : index
    %117 = vector.load %arg7[%c0_76, %c0_77] : memref<4x1xf32, #tpu.memory_space<vmem>>, vector<4x1xf32>
    %118 = vector.broadcast %117 : vector<4x1xf32> to vector<4x256xf32>
    %119 = arith.addf %116, %118 : vector<4x256xf32>
    %120 = arith.addf %119, %32 : vector<4x256xf32>
    %cst_78 = arith.constant 0.000000e+00 : f32
    %121 = vector.broadcast %cst_78 : f32 to vector<4x256xf32>
    %122 = arith.maximumf %120, %121 : vector<4x256xf32>
    %c0_79 = arith.constant 0 : index
    %c0_80 = arith.constant 0 : index
    %c0_81 = arith.constant 0 : index
    %123 = vector.load %arg8[%c0_79, %c0_80, %c0_81] : memref<1x4x256xf32, #tpu.memory_space<vmem>>, vector<1x4x256xf32>
    %124 = vector.shape_cast %123 : vector<1x4x256xf32> to vector<4x256xf32>
    %125 = vector.shape_cast %122 : vector<4x256xf32> to vector<1x4x256xf32>
    tpu.vector_store %arg8[%c0_79, %c0_80, %c0_81], %125 {strides = array<i32>} : memref<1x4x256xf32, #tpu.memory_space<vmem>>, vector<1x4x256xf32>,
    return
  }
  func.func @transform_0(%arg0: i32) -> (i32, i32, i32) {
    %c0_i32 = arith.constant 0 : i32
    %c0_i32_0 = arith.constant 0 : i32
    %c0_i32_1 = arith.constant 0 : i32
    return %arg0, %c0_i32, %c0_i32_0 : i32, i32, i32
  }
  func.func @transform_1(%arg0: i32) -> (i32, i32) {
    %c0_i32 = arith.constant 0 : i32
    %c0_i32_0 = arith.constant 0 : i32
    %c0_i32_1 = arith.constant 0 : i32
    return %c0_i32, %c0_i32_0 : i32, i32
  }
  func.func @transform_2(%arg0: i32) -> (i32, i32) {
    %c0_i32 = arith.constant 0 : i32
    %c0_i32_0 = arith.constant 0 : i32
    %c0_i32_1 = arith.constant 0 : i32
    return %c0_i32, %c0_i32_0 : i32, i32
  }
  func.func @transform_3(%arg0: i32) -> (i32, i32) {
    %c0_i32 = arith.constant 0 : i32
    %c0_i32_0 = arith.constant 0 : i32
    %c0_i32_1 = arith.constant 0 : i32
    return %c0_i32, %c0_i32_0 : i32, i32
  }
  func.func @transform_4(%arg0: i32) -> (i32, i32) {
    %c0_i32 = arith.constant 0 : i32
    %c0_i32_0 = arith.constant 0 : i32
    %c0_i32_1 = arith.constant 0 : i32
    return %c0_i32, %c0_i32_0 : i32, i32
  }
  func.func @transform_5(%arg0: i32) -> (i32, i32) {
    %c0_i32 = arith.constant 0 : i32
    %c0_i32_0 = arith.constant 0 : i32
    %c0_i32_1 = arith.constant 0 : i32
    return %c0_i32, %c0_i32_0 : i32, i32
  }
  func.func @transform_6(%arg0: i32) -> (i32, i32) {
    %c0_i32 = arith.constant 0 : i32
    %c0_i32_0 = arith.constant 0 : i32
    %c0_i32_1 = arith.constant 0 : i32
    return %c0_i32, %c0_i32_0 : i32, i32
  }
  func.func @transform_7(%arg0: i32) -> (i32, i32, i32) {
    %c0_i32 = arith.constant 0 : i32
    %c0_i32_0 = arith.constant 0 : i32
    %c0_i32_1 = arith.constant 0 : i32
    return %arg0, %c0_i32, %c0_i32_0 : i32, i32, i32
  }
}

</mosaic_0001>

<llo_original>
// kernel: eresidual_block.1
$region0: #{eresidual_block.1}
  #allocation0 [shape = 'u32[]', space=smem, size = 0x4, offset = 0x4, fixed_abs, tag = 'smem constant byte address 0x4 - core index']
  #allocation1 [shape = 'u32[144,128]{1,0:T(1,128)}', space=vmem, size = 0x12000, scoped, tag = 'internal scratch']
  #allocation2 [shape = 'f32[36,256]{1,0:T(8,128)}', space=vmem, size = 0xa000, scoped, tag = 'scratch operand']
  %s0 = inlined_call_operand.vmem [shape: f32[2,4,256], index: 0, kind: input, shape index: {}]
  %s1 = inlined_call_operand.vmem [shape: f32[4,36], index: 1, kind: input, shape index: {}]
  %s2 = inlined_call_operand.vmem [shape: f32[4,1], index: 2, kind: input, shape index: {}]
  %s3 = inlined_call_operand.vmem [shape: f32[4,36], index: 3, kind: input, shape index: {}]
  %s4 = inlined_call_operand.vmem [shape: f32[4,1], index: 4, kind: input, shape index: {}]
  %s5 = inlined_call_operand.vmem [shape: f32[4,4], index: 5, kind: input, shape index: {}]
  %s6 = inlined_call_operand.vmem [shape: f32[4,1], index: 6, kind: input, shape index: {}]
  %s7 = inlined_call_operand.vmem [shape: f32[2,4,256], index: 7, kind: output, shape index: {}]
  %s8 = sld [smem:[#allocation0]]
  $region61: #{eresidual_block.1} parent=0
    _
  %s10 = ssub.s32 1, %s8
  %s11 = scalar_select 0, %s10, %s8
  loop: start=0, step=1, limit=4
  $region2: #{eresidual_block.1} parent=0 // loop_pre_header
    _
  $region3: #{eresidual_block.1} parent=0 // loop_header
    %s13 = sphi 0, %s17
    %p14 = scmp.ge.s32.totalorder %s13, 4
    %s23 = sphi 0, %s25
    %s26 = sphi 0, %s23
    %s27 = sphi 0, %s26
    %s43 = sphi 0, %s27
    %s47 = sphi 0, %s47
    %s49 = sphi 0, %s47
    %s50 = sphi 0, %s49
    %s64 = sphi 0, %s50
    %s68 = sphi 0, %s68
    %s70 = sphi 0, %s68
    %s71 = sphi 0, %s70
    %s85 = sphi 0, %s71
    %s89 = sphi 0, %s89
    %s91 = sphi 0, %s89
    %s92 = sphi 0, %s91
    %s106 = sphi 0, %s92
    %s110 = sphi 0, %s110
    %s112 = sphi 0, %s110
    %s113 = sphi 0, %s112
    %s127 = sphi 0, %s113
    %s131 = sphi 0, %s131
    %s133 = sphi 0, %s131
    %s134 = sphi 0, %s133
    %s148 = sphi 0, %s134
    %s152 = sphi 0, %s152
    %s154 = sphi 0, %s152
    %s155 = sphi 0, %s154
    %s169 = sphi 0, %s155
    %s175 = sphi 0, %s177
    %s178 = sphi 0, %s175
    %s179 = sphi 0, %s178
    %s195 = sphi 0, %s179
  $region4: #{eresidual_block.1} parent=0 // loop_header_branch
    %16 = sbr.rel (%p14) target = $region8
  $region5: #{eresidual_block.1} parent=0 // loop_body
    %s18 = ssub.s32 %s13, 1
    %s19 = ssub.s32 %s13, 2
    %s20 = sadd.s32 %s13, 1
    %s21 = ssub.s32 %s13, %s20
    %p22 = scmp.eq.s32.totalorder %s21, 0
    %s24 = sadd.s32 %s23, 1
    %s25 = scalar_select %p22, %s23, %s24
    %p28 = pneg %p22
    %p29 = scmp.eq.s32.totalorder %s13, 1
    %p30 = por %p28, %p29
    %p31 = scmp.ne.s32.totalorder %s23, %s26
    %p32 = scmp.eq.s32.totalorder %s13, 0
    %p33 = por %p31, %p32
    %p34 = scmp.ne.s32.totalorder %s23, %s26
    %p35 = scmp.eq.s32.totalorder %s18, 1
    %p36 = por %p34, %p35
    %p37 = scmp.ne.s32.totalorder %s26, %s27
    %p38 = scmp.eq.s32.totalorder %s18, 0
    %p39 = por %p37, %p38
    %p40 = scmp.ne.s32.totalorder %s26, %s27
    %p41 = scmp.eq.s32.totalorder %s19, 1
    %p42 = por %p40, %p41
    %p44 = scmp.ne.s32.totalorder %s27, %s43
    %p45 = scmp.eq.s32.totalorder %s19, 0
    %p46 = por %p44, %p45
    %s48 = sadd.s32 %s47, 1
    %p51 = scmp.eq.s32.totalorder %s13, 1
    %p52 = scmp.ne.s32.totalorder %s47, %s49
    %p53 = scmp.eq.s32.totalorder %s13, 0
    %p54 = por %p52, %p53
    %p55 = scmp.ne.s32.totalorder %s47, %s49
    %p56 = scmp.eq.s32.totalorder %s18, 1
    %p57 = por %p55, %p56
    %p58 = scmp.ne.s32.totalorder %s49, %s50
    %p59 = scmp.eq.s32.totalorder %s18, 0
    %p60 = por %p58, %p59
    %p61 = scmp.ne.s32.totalorder %s49, %s50
    %p62 = scmp.eq.s32.totalorder %s19, 1
    %p63 = por %p61, %p62
    %p65 = scmp.ne.s32.totalorder %s50, %s64
    %p66 = scmp.eq.s32.totalorder %s19, 0
    %p67 = por %p65, %p66
    %s69 = sadd.s32 %s68, 1
    %p72 = scmp.eq.s32.totalorder %s13, 1
    %p73 = scmp.ne.s32.totalorder %s68, %s70
    %p74 = scmp.eq.s32.totalorder %s13, 0
    %p75 = por %p73, %p74
    %p76 = scmp.ne.s32.totalorder %s68, %s70
    %p77 = scmp.eq.s32.totalorder %s18, 1
    %p78 = por %p76, %p77
    %p79 = scmp.ne.s32.totalorder %s70, %s71
    %p80 = scmp.eq.s32.totalorder %s18, 0
    %p81 = por %p79, %p80
    %p82 = scmp.ne.s32.totalorder %s70, %s71
    %p83 = scmp.eq.s32.totalorder %s19, 1
    %p84 = por %p82, %p83
    %p86 = scmp.ne.s32.totalorder %s71, %s85
    %p87 = scmp.eq.s32.totalorder %s19, 0
    %p88 = por %p86, %p87
    %s90 = sadd.s32 %s89, 1
    %p93 = scmp.eq.s32.totalorder %s13, 1
    %p94 = scmp.ne.s32.totalorder %s89, %s91
    %p95 = scmp.eq.s32.totalorder %s13, 0
    %p96 = por %p94, %p95
    %p97 = scmp.ne.s32.totalorder %s89, %s91
    %p98 = scmp.eq.s32.totalorder %s18, 1
    %p99 = por %p97, %p98
    %p100 = scmp.ne.s32.totalorder %s91, %s92
    %p101 = scmp.eq.s32.totalorder %s18, 0
    %p102 = por %p100, %p101
    %p103 = scmp.ne.s32.totalorder %s91, %s92
    %p104 = scmp.eq.s32.totalorder %s19, 1
    %p105 = por %p103, %p104
    %p107 = scmp.ne.s32.totalorder %s92, %s106
    %p108 = scmp.eq.s32.totalorder %s19, 0
    %p109 = por %p107, %p108
    %s111 = sadd.s32 %s110, 1
    %p114 = scmp.eq.s32.totalorder %s13, 1
    %p115 = scmp.ne.s32.totalorder %s110, %s112
    %p116 = scmp.eq.s32.totalorder %s13, 0
    %p117 = por %p115, %p116
    %p118 = scmp.ne.s32.totalorder %s110, %s112
    %p119 = scmp.eq.s32.totalorder %s18, 1
    %p120 = por %p118, %p119
    %p121 = scmp.ne.s32.totalorder %s112, %s113
    %p122 = scmp.eq.s32.totalorder %s18, 0
    %p123 = por %p121, %p122
    %p124 = scmp.ne.s32.totalorder %s112, %s113
    %p125 = scmp.eq.s32.totalorder %s19, 1
    %p126 = por %p124, %p125
    %p128 = scmp.ne.s32.totalorder %s113, %s127
    %p129 = scmp.eq.s32.totalorder %s19, 0
    %p130 = por %p128, %p129
    %s132 = sadd.s32 %s131, 1
    %p135 = scmp.eq.s32.totalorder %s13, 1
    %p136 = scmp.ne.s32.totalorder %s131, %s133
    %p137 = scmp.eq.s32.totalorder %s13, 0
    %p138 = por %p136, %p137
    %p139 = scmp.ne.s32.totalorder %s131, %s133
    %p140 = scmp.eq.s32.totalorder %s18, 1
    %p141 = por %p139, %p140
    %p142 = scmp.ne.s32.totalorder %s133, %s134
    %p143 = scmp.eq.s32.totalorder %s18, 0
    %p144 = por %p142, %p143
    %p145 = scmp.ne.s32.totalorder %s133, %s134
    %p146 = scmp.eq.s32.totalorder %s19, 1
    %p147 = por %p145, %p146
    %p149 = scmp.ne.s32.totalorder %s134, %s148
    %p150 = scmp.eq.s32.totalorder %s19, 0
    %p151 = por %p149, %p150
    %s153 = sadd.s32 %s152, 1
    %p156 = scmp.eq.s32.totalorder %s13, 1
    %p157 = scmp.ne.s32.totalorder %s152, %s154
    %p158 = scmp.eq.s32.totalorder %s13, 0
    %p159 = por %p157, %p158
    %p160 = scmp.ne.s32.totalorder %s152, %s154
    %p161 = scmp.eq.s32.totalorder %s18, 1
    %p162 = por %p160, %p161
    %p163 = scmp.ne.s32.totalorder %s154, %s155
    %p164 = scmp.eq.s32.totalorder %s18, 0
    %p165 = por %p163, %p164
    %p166 = scmp.ne.s32.totalorder %s154, %s155
    %p167 = scmp.eq.s32.totalorder %s19, 1
    %p168 = por %p166, %p167
    %p170 = scmp.ne.s32.totalorder %s155, %s169
    %p171 = scmp.eq.s32.totalorder %s19, 0
    %p172 = por %p170, %p171
    %s173 = ssub.s32 %s13, %s20
    %p174 = scmp.eq.s32.totalorder %s173, 0
    %s176 = sadd.s32 %s175, 1
    %s177 = scalar_select %p174, %s175, %s176
    %p180 = pneg %p174
    %p181 = scmp.eq.s32.totalorder %s13, 1
    %p182 = por %p180, %p181
    %p183 = scmp.ne.s32.totalorder %s175, %s178
    %p184 = scmp.eq.s32.totalorder %s13, 0
    %p185 = por %p183, %p184
    %p186 = scmp.ne.s32.totalorder %s175, %s178
    %p187 = scmp.eq.s32.totalorder %s18, 1
    %p188 = por %p186, %p187
    %p189 = scmp.ne.s32.totalorder %s178, %s179
    %p190 = scmp.eq.s32.totalorder %s18, 0
    %p191 = por %p189, %p190
    %p192 = scmp.ne.s32.totalorder %s178, %s179
    %p193 = scmp.eq.s32.totalorder %s19, 1
    %p194 = por %p192, %p193
    %p196 = scmp.ne.s32.totalorder %s179, %s195
    %p197 = scmp.eq.s32.totalorder %s19, 0
    %p198 = por %p196, %p197
    %p199 = scmp.le.s32.totalorder 1, %s13
    %p200 = scmp.lt.s32.totalorder %s13, 3
    %p201 = pnand %p199, %p200
    %p202 = pneg %p201
    // Predicated region
    $region9: #{eresidual_block.1} parent=5 // pred_check
      _
    $region10: #{eresidual_block.1} parent=5 // pred_check_branch
      %204 = sbr.rel (%p201) target = $region12
    $region11: #{eresidual_block.1} parent=5 // pred_region
      %s205 = ssub.s32 %s13, 1
      // Predicated region
      $region13: #{eresidual_block.1} parent=11 // pred_check
        %p206 = pneg %p60
      $region14: #{eresidual_block.1} parent=11 // pred_check_branch
        %208 = sbr.rel (%p206) target = $region16
      $region15: #{eresidual_block.1} parent=11 // pred_region
        _
      $region16: #{eresidual_block.1} parent=11 // pred_fallthru
        _
      // Predicated region
      $region17: #{eresidual_block.1} parent=11 // pred_check
        %p209 = pneg %p81
      $region18: #{eresidual_block.1} parent=11 // pred_check_branch
        %211 = sbr.rel (%p209) target = $region20
      $region19: #{eresidual_block.1} parent=11 // pred_region
        _
      $region20: #{eresidual_block.1} parent=11 // pred_fallthru
        _
      // Predicated region
      $region21: #{eresidual_block.1} parent=11 // pred_check
        %p212 = pneg %p102
      $region22: #{eresidual_block.1} parent=11 // pred_check_branch
        %214 = sbr.rel (%p212) target = $region24
      $region23: #{eresidual_block.1} parent=11 // pred_region
        _
      $region24: #{eresidual_block.1} parent=11 // pred_fallthru
        _
      // Predicated region
      $region25: #{eresidual_block.1} parent=11 // pred_check
        %p215 = pneg %p123
      $region26: #{eresidual_block.1} parent=11 // pred_check_branch
        %217 = sbr.rel (%p215) target = $region28
      $region27: #{eresidual_block.1} parent=11 // pred_region
        _
      $region28: #{eresidual_block.1} parent=11 // pred_fallthru
        _
      // Predicated region
      $region29: #{eresidual_block.1} parent=11 // pred_check
        %p218 = pneg %p144
      $region30: #{eresidual_block.1} parent=11 // pred_check_branch
        %220 = sbr.rel (%p218) target = $region32
      $region31: #{eresidual_block.1} parent=11 // pred_region
        _
      $region32: #{eresidual_block.1} parent=11 // pred_fallthru
        _
      // Predicated region
      $region33: #{eresidual_block.1} parent=11 // pred_check
        %p221 = pneg %p165
      $region34: #{eresidual_block.1} parent=11 // pred_check_branch
        %223 = sbr.rel (%p221) target = $region36
      $region35: #{eresidual_block.1} parent=11 // pred_region
        _
      $region36: #{eresidual_block.1} parent=11 // pred_fallthru
        _
    $region12: #{eresidual_block.1} parent=5 // pred_fallthru
      _
    %p224 = scmp.lt.s32.totalorder %s13, 2
    // Predicated region
    $region37: #{eresidual_block.1} parent=5 // pred_check
      %p225 = pneg %p224
    $region38: #{eresidual_block.1} parent=5 // pred_check_branch
      %227 = sbr.rel (%p225) target = $region40
    $region39: #{eresidual_block.1} parent=5 // pred_region
      // Predicated region
      $region41: #{eresidual_block.1} parent=39 // pred_check
        %p228 = pneg %p33
      $region42: #{eresidual_block.1} parent=39 // pred_check_branch
        %230 = sbr.rel (%p228) target = $region44
      $region43: #{eresidual_block.1} parent=39 // pred_region
        %p231 = scmp.lt.s32.totalorder %s13, 1
        %s232 = scalar_select %p231, %s13, 1
        %s233 = smul.addr %s232, 2
        %s234 = smul.addr %s233, 4
        %s235 = scalar_lea.vmem %s0, %s234
      $region44: #{eresidual_block.1} parent=39 // pred_fallthru
        _
    $region40: #{eresidual_block.1} parent=5 // pred_fallthru
      _
    %p236 = scmp.le.s32.totalorder 1, %s13
    %p237 = scmp.lt.s32.totalorder %s13, 3
    %p238 = pnand %p236, %p237
    %p239 = pneg %p238
    // Predicated region
    $region45: #{eresidual_block.1} parent=5 // pred_check
      _
    $region46: #{eresidual_block.1} parent=5 // pred_check_branch
      %241 = sbr.rel (%p238) target = $region48
    $region47: #{eresidual_block.1} parent=5 // pred_region
      %s242 = ssub.s32 %s13, 1
      %p243 = scmp.lt.s32.totalorder %s18, 1
      %s244 = scalar_select %p243, %s18, 1
      %s245 = smul.addr %s244, 2
      %s246 = smul.addr %s245, 4
      %s247 = scalar_lea.vmem %s0, %s246
      %p248 = pneg %p39
      %p249 = pneg %p36
      %p250 = pneg %p60
      %p251 = pneg %p57
      %p252 = pneg %p81
      %p253 = pneg %p78
      %p254 = pneg %p102
      %p255 = pneg %p99
      %p256 = pneg %p123
      %p257 = pneg %p120
      %p258 = pneg %p144
      %p259 = pneg %p141
      %p260 = pneg %p165
      %p261 = pneg %p162
      %p262 = pneg %p191
      %p263 = pneg %p188
      %p264 = scmp.lt.s32.totalorder %s18, 1
      %s265 = scalar_select %p264, %s18, 1
      %s266 = smul.addr %s265, 2
      %s267 = smul.addr %s266, 4
      %s268 = scalar_lea.vmem %s7, %s267
      %p269 = scmp.lt.s32.totalorder %s18, 1
      %s270 = scalar_select %p269, %s18, 1
      %s271 = smul.addr %s270, 2
      %s272 = smul.addr %s271, 4
      %s273 = scalar_lea.vmem %s0, %s272
      %p274 = scmp.lt.s32.totalorder %s18, 1
      %s275 = scalar_select %p274, %s18, 1
      %s276 = smul.addr %s275, 2
      %s277 = smul.addr %s276, 4
      %s278 = scalar_lea.vmem %s7, %s277
      %v279 = vlaneseq
      %v280 = vand.u32 %v279, 127
      %v281 = vadd.s32 %v280, 128
      %v282 = vand.u32 %v280, 15
      %v283 = vand.u32 %v281, 15
      %vm284 = vcmp.ge.s32.totalorder %v280, 16
      %vm285 = vcmp.ge.s32.totalorder %v281, 16
      %vm286 = vcmp.lt.s32.totalorder %v280, 240
      %vm287 = vcmp.lt.s32.totalorder %v281, 240
      %vm288 = vcmp.ge.s32.totalorder %v282, 1
      %vm289 = vcmp.ge.s32.totalorder %v283, 1
      %vm290 = vcmp.le.s32.totalorder %v282, 14
      %vm291 = vcmp.le.s32.totalorder %v283, 14
      %vm292 = vmand %vm284, %vm288
      %vm293 = vmand %vm285, %vm289
      %v294 = vsel %vm292, 1, 0
      %v295 = vsel %vm293, 1, 0
      %vm296 = vcmp.eq.s32.totalorder %v294, 1
      %vm297 = vcmp.eq.s32.totalorder %v295, 1
      %v298 = vsel %vm284, 1, 0
      %v299 = vsel %vm285, 1, 0
      %vm300 = vcmp.eq.s32.totalorder %v298, 1
      %vm301 = vcmp.eq.s32.totalorder %v299, 1
      %vm302 = vmand %vm284, %vm290
      %vm303 = vmand %vm285, %vm291
      %v304 = vsel %vm302, 1, 0
      %v305 = vsel %vm303, 1, 0
      %vm306 = vcmp.eq.s32.totalorder %v304, 1
      %vm307 = vcmp.eq.s32.totalorder %v305, 1
      %v308 = vsel %vm288, 1, 0
      %v309 = vsel %vm289, 1, 0
      %vm310 = vcmp.eq.s32.totalorder %v308, 1
      %vm311 = vcmp.eq.s32.totalorder %v309, 1
      %v312 = vsel %vm290, 1, 0
      %v313 = vsel %vm291, 1, 0
      %vm314 = vcmp.eq.s32.totalorder %v312, 1
      %vm315 = vcmp.eq.s32.totalorder %v313, 1
      %vm316 = vmand %vm286, %vm288
      %vm317 = vmand %vm287, %vm289
      %v318 = vsel %vm316, 1, 0
      %v319 = vsel %vm317, 1, 0
      %vm320 = vcmp.eq.s32.totalorder %v318, 1
      %vm321 = vcmp.eq.s32.totalorder %v319, 1
      %v322 = vsel %vm286, 1, 0
      %v323 = vsel %vm287, 1, 0
      %vm324 = vcmp.eq.s32.totalorder %v322, 1
      %vm325 = vcmp.eq.s32.totalorder %v323, 1
      %vm326 = vmand %vm286, %vm290
      %vm327 = vmand %vm287, %vm291
      %v328 = vsel %vm326, 1, 0
      %v329 = vsel %vm327, 1, 0
      %vm330 = vcmp.eq.s32.totalorder %v328, 1
      %vm331 = vcmp.eq.s32.totalorder %v329, 1
      %v332 = vld [vmem:[%s273] sm:$0xff]
      %v334 = vcombine.high %v332, %v332
      %336 = vrot.lane.b32.xlu0 %v332, 17
      %v337 = vpop.permute.xlu0 %336
      %338 = vrot.lane.b32.xlu0 %v334, 17
      %v339 = vpop.permute.xlu0 %338
      %vm340 = vcmp.lt.s32.totalorder %v280, 17
      %v341 = vsel %vm340, %v337, %v339
      %v342 = vsel %vm340, %v339, %v337
      %v343 = vsel %vm296, %v342, 0.0
      %v344 = vsel %vm297, %v341, 0.0
      %345 = vst [vmem:[#allocation2] sm:$0xf] %v343
      %346 = vst [vmem:[#allocation2 + $0x8] sm:$0xf] %v344
      %347 = vrot.lane.b32.xlu0 %v332, 16
      %v348 = vpop.permute.xlu0 %347
      %349 = vrot.lane.b32.xlu0 %v334, 16
      %v350 = vpop.permute.xlu0 %349
      %vm351 = vcmp.lt.s32.totalorder %v280, 16
      %v352 = vsel %vm351, %v348, %v350
      %v353 = vsel %vm351, %v350, %v348
      %v354 = vsel %vm300, %v353, 0.0
      %v355 = vsel %vm301, %v352, 0.0
      %v358 = vrot.slane %v354, 4
      %v359 = vrot.slane %v355, 4
      %362 = vst [vmem:[#allocation2] sm:$0xf0] %v358
      %363 = vst [vmem:[#allocation2 + $0x8] sm:$0xf0] %v359
      %364 = vrot.lane.b32.xlu0 %v332, 15
      %v365 = vpop.permute.xlu0 %364
      %366 = vrot.lane.b32.xlu0 %v334, 15
      %v367 = vpop.permute.xlu0 %366
      %vm368 = vcmp.lt.s32.totalorder %v280, 15
      %v369 = vsel %vm368, %v365, %v367
      %v370 = vsel %vm368, %v367, %v365
      %v371 = vsel %vm306, %v370, 0.0
      %v372 = vsel %vm307, %v369, 0.0
      %373 = vst [vmem:[#allocation2 + $0x10] sm:$0xf] %v371
      %374 = vst [vmem:[#allocation2 + $0x18] sm:$0xf] %v372
      %375 = vrot.lane.b32.xlu0 %v332, 1
      %v376 = vpop.permute.xlu0 %375
      %377 = vrot.lane.b32.xlu0 %v334, 1
      %v378 = vpop.permute.xlu0 %377
      %vm379 = vcmp.lt.s32.totalorder %v280, 1
      %v380 = vsel %vm379, %v376, %v378
      %v381 = vsel %vm379, %v378, %v376
      %v382 = vsel %vm310, %v381, 0.0
      %v383 = vsel %vm311, %v380, 0.0
      %v386 = vrot.slane %v382, 4
      %v387 = vrot.slane %v383, 4
      %390 = vst [vmem:[#allocation2 + $0x10] sm:$0xf0] %v386
      %391 = vst [vmem:[#allocation2 + $0x18] sm:$0xf0] %v387
      %392 = vst [vmem:[#allocation2 + $0x20] sm:$0xf] %v332
      %393 = vst [vmem:[#allocation2 + $0x28] sm:$0xf] %v334
      %394 = vrot.lane.b32.xlu0 %v332, 127
      %v395 = vpop.permute.xlu0 %394
      %396 = vrot.lane.b32.xlu0 %v334, 127
      %v397 = vpop.permute.xlu0 %396
      %vm398 = vcmp.lt.s32.totalorder %v280, 127
      %v399 = vsel %vm398, %v395, %v397
      %v400 = vsel %vm398, %v397, %v395
      %v401 = vsel %vm314, %v399, 0.0
      %v402 = vsel %vm315, %v400, 0.0
      %v405 = vrot.slane %v401, 4
      %v406 = vrot.slane %v402, 4
      %409 = vst [vmem:[#allocation2 + $0x20] sm:$0xf0] %v405
      %410 = vst [vmem:[#allocation2 + $0x28] sm:$0xf0] %v406
      %411 = vrot.lane.b32.xlu0 %v332, 113
      %v412 = vpop.permute.xlu0 %411
      %413 = vrot.lane.b32.xlu0 %v334, 113
      %v414 = vpop.permute.xlu0 %413
      %vm415 = vcmp.lt.s32.totalorder %v280, 113
      %v416 = vsel %vm415, %v412, %v414
      %v417 = vsel %vm415, %v414, %v412
      %v418 = vsel %vm320, %v416, 0.0
      %v419 = vsel %vm321, %v417, 0.0
      %420 = vst [vmem:[#allocation2 + $0x30] sm:$0xf] %v418
      %421 = vst [vmem:[#allocation2 + $0x38] sm:$0xf] %v419
      %422 = vrot.lane.b32.xlu0 %v332, 112
      %v423 = vpop.permute.xlu0 %422
      %424 = vrot.lane.b32.xlu0 %v334, 112
      %v425 = vpop.permute.xlu0 %424
      %vm426 = vcmp.lt.s32.totalorder %v280, 112
      %v427 = vsel %vm426, %v423, %v425
      %v428 = vsel %vm426, %v425, %v423
      %v429 = vsel %vm324, %v427, 0.0
      %v430 = vsel %vm325, %v428, 0.0
      %v433 = vrot.slane %v429, 4
      %v434 = vrot.slane %v430, 4
      %437 = vst [vmem:[#allocation2 + $0x30] sm:$0xf0] %v433
      %438 = vst [vmem:[#allocation2 + $0x38] sm:$0xf0] %v434
      %439 = vrot.lane.b32.xlu0 %v332, 111
      %v440 = vpop.permute.xlu0 %439
      %441 = vrot.lane.b32.xlu0 %v334, 111
      %v442 = vpop.permute.xlu0 %441
      %vm443 = vcmp.lt.s32.totalorder %v280, 111
      %v444 = vsel %vm443, %v440, %v442
      %v445 = vsel %vm443, %v442, %v440
      %v446 = vsel %vm330, %v444, 0.0
      %v447 = vsel %vm331, %v445, 0.0
      %448 = vst [vmem:[#allocation2 + $0x40] sm:$0xf] %v446
      %449 = vst [vmem:[#allocation2 + $0x48] sm:$0xf] %v447
      %v450 = vld [vmem:[%s1] sm:$0xf]
      %v451 = vld [vmem:[#allocation2] sm:$0xff]
      %v452 = vld [vmem:[#allocation2 + $0x8] sm:$0xff]
      %v453 = vld [vmem:[#allocation2 + $0x10] sm:$0xff]
      %v454 = vld [vmem:[#allocation2 + $0x18] sm:$0xff]
      %v455 = vld [vmem:[#allocation2 + $0x20] sm:$0xff]
      %v456 = vld [vmem:[#allocation2 + $0x28] sm:$0xff]
      %v457 = vld [vmem:[#allocation2 + $0x30] sm:$0xff]
      %v458 = vld [vmem:[#allocation2 + $0x38] sm:$0xff]
      %v459 = vld [vmem:[#allocation2 + $0x40] sm:$0xf]
      %v460 = vld [vmem:[#allocation2 + $0x48] sm:$0xf]
      %v461 = vld [vmem:[%s2] sm:$0xf]
      %463 = vset.pattern.permute.xlu0 0
      %464 = vperm.xlu0 %463, %v461
      %v465 = vpop.permute.xlu0 %464
      %vm467 = vcmask 293888
      %v469 = vsel %vm467, %v450, 0
      %vm471 = vcmask 1043456
      %v473 = vsel %vm471, %v459, 0
      %v476 = vsel %vm471, %v460, 0
      %478 = vmatprep.subr.mxu0 %v452
      %479 = vmatpush1.msra.mxu0 %v451
      %480 = vmatprep.subr.mxu0 %v454
      %481 = vmatpush1.msra.mxu0 %v453
      %482 = vmatprep.subr.mxu0 %v456
      %483 = vmatpush1.msra.mxu0 %v455
      %484 = vmatprep.subr.mxu0 %v458
      %485 = vmatpush1.msra.mxu0 %v457
      %486 = vmatprep.subr.mxu0 %v476
      %487 = vmatpush1.msra.mxu0 %v473
      %488 = vmatprep.subr.mxu0 0.0
      %489 = vmatpush1.msra.mxu0 0.0
      %490 = vmatprep.subr.mxu0 0.0
      %491 = vmatpush1.msra.mxu0 0.0
      %492 = vmatprep.subr.mxu0 0.0
      %493 = vmatpush1.msra.mxu0 0.0
      %494 = vmatprep.subr.mxu0 0.0
      %495 = vmatpush1.msra.mxu0 0.0
      %496 = vmatprep.subr.mxu0 0.0
      %497 = vmatpush1.msra.mxu0 0.0
      %498 = vmatprep.subr.mxu0 0.0
      %499 = vmatpush1.msra.mxu0 0.0
      %500 = vmatprep.subr.mxu0 0.0
      %501 = vmatpush1.msra.mxu0 0.0
      %502 = vmatprep.subr.mxu0 0.0
      %503 = vmatpush1.msra.mxu0 0.0
      %504 = vmatprep.subr.mxu0 0.0
      %505 = vmatpush1.msra.mxu0 0.0
      %506 = vmatprep.subr.mxu0 0.0
      %507 = vmatpush1.msra.mxu0 0.0
      %508 = vmatprep.subr.mxu0 0.0
      %509 = vmatpush1.msra.mxu0 0.0
      %510 = vmatprep.subr.mxu0 0.0
      %511 = vmatpush1.msra.mxu0 0.0
      %512 = vmatprep.subr.mxu0 0.0
      %513 = vmatpush1.msra.mxu0 0.0
      %514 = vmatprep.subr.mxu0 0.0
      %515 = vmatpush1.msra.mxu0 0.0
      %516 = vmatprep.subr.mxu0 0.0
      %517 = vmatpush1.msra.mxu0 0.0
      %518 = vmatprep.subr.mxu0 0.0
      %519 = vmatpush1.msra.mxu0 0.0
      %520 = vmatprep.subr.mxu0 0.0
      %521 = vmatpush1.msra.mxu0 0.0
      %522 = vmatprep.subr.mxu0 0.0
      %523 = vmatpush1.msra.mxu0 0.0
      %524 = vmatprep.subr.mxu0 0.0
      %525 = vmatpush1.msra.mxu0 0.0
      %526 = vmatprep.subr.mxu0 0.0
      %527 = vmatpush1.msra.mxu0 0.0
      %528 = vmatprep.subr.mxu0 0.0
      %529 = vmatpush1.msra.mxu0 0.0
      %530 = vmatprep.subr.mxu0 0.0
      %531 = vmatpush1.msra.mxu0 0.0
      %532 = vmatprep.subr.mxu0 0.0
      %533 = vmatpush1.msra.mxu0 0.0
      %534 = vmatprep.subr.mxu0 0.0
      %535 = vmatpush1.msra.mxu0 0.0
      %536 = vmatprep.subr.mxu0 0.0
      %537 = vmatpush1.msra.mxu0 0.0
      %538 = vmatprep.subr.mxu0 0.0
      %539 = vmatpush1.msra.mxu0 0.0
      %540 = vmatprep.subr.mxu0 0.0
      %541 = vmatpush1.msra.mxu0 0.0
      %542 = vmatprep.mubr.f32.mxu0 0.0
      %543 = vmatmul.mubr.f32.gmra.mrb[0].mxu0 %v469
      %v544 = vpop.f32.mrb[0].mxu0
      %v545 = vadd.f32 %v465, %v544
      %v546 = vpop.f32.mrb[0].mxu0
      %v547 = vadd.f32 %v465, %v546
      %548 = vdwg.mxu0
      %v549 = vmax.f32 %v545, 0.0
      %v550 = vmax.f32 %v547, 0.0
      %551 = vrot.lane.b32.xlu0 %v549, 17
      %v552 = vpop.permute.xlu0 %551
      %553 = vrot.lane.b32.xlu0 %v550, 17
      %v554 = vpop.permute.xlu0 %553
      %v555 = vsel %vm340, %v552, %v554
      %v556 = vsel %vm340, %v554, %v552
      %v557 = vsel %vm296, %v556, 0.0
      %v558 = vsel %vm297, %v555, 0.0
      %559 = vst [vmem:[#allocation2] sm:$0xf] %v557
      %560 = vst [vmem:[#allocation2 + $0x8] sm:$0xf] %v558
      %561 = vrot.lane.b32.xlu0 %v549, 16
      %v562 = vpop.permute.xlu0 %561
      %563 = vrot.lane.b32.xlu0 %v550, 16
      %v564 = vpop.permute.xlu0 %563
      %v565 = vsel %vm351, %v562, %v564
      %v566 = vsel %vm351, %v564, %v562
      %v567 = vsel %vm300, %v566, 0.0
      %v568 = vsel %vm301, %v565, 0.0
      %v571 = vrot.slane %v567, 4
      %v572 = vrot.slane %v568, 4
      %575 = vst [vmem:[#allocation2] sm:$0xf0] %v571
      %576 = vst [vmem:[#allocation2 + $0x8] sm:$0xf0] %v572
      %577 = vrot.lane.b32.xlu0 %v549, 15
      %v578 = vpop.permute.xlu0 %577
      %579 = vrot.lane.b32.xlu0 %v550, 15
      %v580 = vpop.permute.xlu0 %579
      %v581 = vsel %vm368, %v578, %v580
      %v582 = vsel %vm368, %v580, %v578
      %v583 = vsel %vm306, %v582, 0.0
      %v584 = vsel %vm307, %v581, 0.0
      %585 = vst [vmem:[#allocation2 + $0x10] sm:$0xf] %v583
      %586 = vst [vmem:[#allocation2 + $0x18] sm:$0xf] %v584
      %587 = vrot.lane.b32.xlu0 %v549, 1
      %v588 = vpop.permute.xlu0 %587
      %589 = vrot.lane.b32.xlu0 %v550, 1
      %v590 = vpop.permute.xlu0 %589
      %v591 = vsel %vm379, %v588, %v590
      %v592 = vsel %vm379, %v590, %v588
      %v593 = vsel %vm310, %v592, 0.0
      %v594 = vsel %vm311, %v591, 0.0
      %v597 = vrot.slane %v593, 4
      %v598 = vrot.slane %v594, 4
      %601 = vst [vmem:[#allocation2 + $0x10] sm:$0xf0] %v597
      %602 = vst [vmem:[#allocation2 + $0x18] sm:$0xf0] %v598
      %603 = vst [vmem:[#allocation2 + $0x20] sm:$0xf] %v549
      %604 = vst [vmem:[#allocation2 + $0x28] sm:$0xf] %v550
      %605 = vrot.lane.b32.xlu0 %v549, 127
      %v606 = vpop.permute.xlu0 %605
      %607 = vrot.lane.b32.xlu0 %v550, 127
      %v608 = vpop.permute.xlu0 %607
      %v609 = vsel %vm398, %v606, %v608
      %v610 = vsel %vm398, %v608, %v606
      %v611 = vsel %vm314, %v609, 0.0
      %v612 = vsel %vm315, %v610, 0.0
      %v615 = vrot.slane %v611, 4
      %v616 = vrot.slane %v612, 4
      %619 = vst [vmem:[#allocation2 + $0x20] sm:$0xf0] %v615
      %620 = vst [vmem:[#allocation2 + $0x28] sm:$0xf0] %v616
      %621 = vrot.lane.b32.xlu0 %v549, 113
      %v622 = vpop.permute.xlu0 %621
      %623 = vrot.lane.b32.xlu0 %v550, 113
      %v624 = vpop.permute.xlu0 %623
      %v625 = vsel %vm415, %v622, %v624
      %v626 = vsel %vm415, %v624, %v622
      %v627 = vsel %vm320, %v625, 0.0
      %v628 = vsel %vm321, %v626, 0.0
      %629 = vst [vmem:[#allocation2 + $0x30] sm:$0xf] %v627
      %630 = vst [vmem:[#allocation2 + $0x38] sm:$0xf] %v628
      %631 = vrot.lane.b32.xlu0 %v549, 112
      %v632 = vpop.permute.xlu0 %631
      %633 = vrot.lane.b32.xlu0 %v550, 112
      %v634 = vpop.permute.xlu0 %633
      %v635 = vsel %vm426, %v632, %v634
      %v636 = vsel %vm426, %v634, %v632
      %v637 = vsel %vm324, %v635, 0.0
      %v638 = vsel %vm325, %v636, 0.0
      %v641 = vrot.slane %v637, 4
      %v642 = vrot.slane %v638, 4
      %645 = vst [vmem:[#allocation2 + $0x30] sm:$0xf0] %v641
      %646 = vst [vmem:[#allocation2 + $0x38] sm:$0xf0] %v642
      %647 = vrot.lane.b32.xlu0 %v549, 111
      %v648 = vpop.permute.xlu0 %647
      %649 = vrot.lane.b32.xlu0 %v550, 111
      %v650 = vpop.permute.xlu0 %649
      %v651 = vsel %vm443, %v648, %v650
      %v652 = vsel %vm443, %v650, %v648
      %v653 = vsel %vm330, %v651, 0.0
      %v654 = vsel %vm331, %v652, 0.0
      %655 = vst [vmem:[#allocation2 + $0x40] sm:$0xf] %v653
      %656 = vst [vmem:[#allocation2 + $0x48] sm:$0xf] %v654
      %v657 = vld [vmem:[%s3] sm:$0xf]
      %v658 = vld [vmem:[#allocation2] sm:$0xff]
      %v659 = vld [vmem:[#allocation2 + $0x8] sm:$0xff]
      %v660 = vld [vmem:[#allocation2 + $0x10] sm:$0xff]
      %v661 = vld [vmem:[#allocation2 + $0x18] sm:$0xff]
      %v662 = vld [vmem:[#allocation2 + $0x20] sm:$0xff]
      %v663 = vld [vmem:[#allocation2 + $0x28] sm:$0xff]
      %v664 = vld [vmem:[#allocation2 + $0x30] sm:$0xff]
      %v665 = vld [vmem:[#allocation2 + $0x38] sm:$0xff]
      %v666 = vld [vmem:[#allocation2 + $0x40] sm:$0xf]
      %v667 = vld [vmem:[#allocation2 + $0x48] sm:$0xf]
      %v668 = vld [vmem:[%s4] sm:$0xf]
      %670 = vset.pattern.permute.xlu0 0
      %671 = vperm.xlu0 %670, %v668
      %v672 = vpop.permute.xlu0 %671
      %v675 = vsel %vm467, %v657, 0
      %v678 = vsel %vm471, %v666, 0
      %v681 = vsel %vm471, %v667, 0
      %683 = vmatprep.subr.mxu0 %v659
      %684 = vmatpush1.msra.mxu0 %v658
      %685 = vmatprep.subr.mxu0 %v661
      %686 = vmatpush1.msra.mxu0 %v660
      %687 = vmatprep.subr.mxu0 %v663
      %688 = vmatpush1.msra.mxu0 %v662
      %689 = vmatprep.subr.mxu0 %v665
      %690 = vmatpush1.msra.mxu0 %v664
      %691 = vmatprep.subr.mxu0 %v681
      %692 = vmatpush1.msra.mxu0 %v678
      %693 = vmatprep.subr.mxu0 0.0
      %694 = vmatpush1.msra.mxu0 0.0
      %695 = vmatprep.subr.mxu0 0.0
      %696 = vmatpush1.msra.mxu0 0.0
      %697 = vmatprep.subr.mxu0 0.0
      %698 = vmatpush1.msra.mxu0 0.0
      %699 = vmatprep.subr.mxu0 0.0
      %700 = vmatpush1.msra.mxu0 0.0
      %701 = vmatprep.subr.mxu0 0.0
      %702 = vmatpush1.msra.mxu0 0.0
      %703 = vmatprep.subr.mxu0 0.0
      %704 = vmatpush1.msra.mxu0 0.0
      %705 = vmatprep.subr.mxu0 0.0
      %706 = vmatpush1.msra.mxu0 0.0
      %707 = vmatprep.subr.mxu0 0.0
      %708 = vmatpush1.msra.mxu0 0.0
      %709 = vmatprep.subr.mxu0 0.0
      %710 = vmatpush1.msra.mxu0 0.0
      %711 = vmatprep.subr.mxu0 0.0
      %712 = vmatpush1.msra.mxu0 0.0
      %713 = vmatprep.subr.mxu0 0.0
      %714 = vmatpush1.msra.mxu0 0.0
      %715 = vmatprep.subr.mxu0 0.0
      %716 = vmatpush1.msra.mxu0 0.0
      %717 = vmatprep.subr.mxu0 0.0
      %718 = vmatpush1.msra.mxu0 0.0
      %719 = vmatprep.subr.mxu0 0.0
      %720 = vmatpush1.msra.mxu0 0.0
      %721 = vmatprep.subr.mxu0 0.0
      %722 = vmatpush1.msra.mxu0 0.0
      %723 = vmatprep.subr.mxu0 0.0
      %724 = vmatpush1.msra.mxu0 0.0
      %725 = vmatprep.subr.mxu0 0.0
      %726 = vmatpush1.msra.mxu0 0.0
      %727 = vmatprep.subr.mxu0 0.0
      %728 = vmatpush1.msra.mxu0 0.0
      %729 = vmatprep.subr.mxu0 0.0
      %730 = vmatpush1.msra.mxu0 0.0
      %731 = vmatprep.subr.mxu0 0.0
      %732 = vmatpush1.msra.mxu0 0.0
      %733 = vmatprep.subr.mxu0 0.0
      %734 = vmatpush1.msra.mxu0 0.0
      %735 = vmatprep.subr.mxu0 0.0
      %736 = vmatpush1.msra.mxu0 0.0
      %737 = vmatprep.subr.mxu0 0.0
      %738 = vmatpush1.msra.mxu0 0.0
      %739 = vmatprep.subr.mxu0 0.0
      %740 = vmatpush1.msra.mxu0 0.0
      %741 = vmatprep.subr.mxu0 0.0
      %742 = vmatpush1.msra.mxu0 0.0
      %743 = vmatprep.subr.mxu0 0.0
      %744 = vmatpush1.msra.mxu0 0.0
      %745 = vmatprep.subr.mxu0 0.0
      %746 = vmatpush1.msra.mxu0 0.0
      %747 = vmatprep.mubr.f32.mxu0 0.0
      %748 = vmatmul.mubr.f32.gmra.mrb[0].mxu0 %v675
      %v749 = vpop.f32.mrb[0].mxu0
      %v750 = vadd.f32 %v672, %v749
      %v751 = vpop.f32.mrb[0].mxu0
      %v752 = vadd.f32 %v672, %v751
      %753 = vdwg.mxu0
      %v754 = vmax.f32 %v750, 0.0
      %v755 = vmax.f32 %v752, 0.0
      %v756 = vld [vmem:[%s5] sm:$0xf]
      %v757 = vld [vmem:[%s6] sm:$0xf]
      %759 = vset.pattern.permute.xlu0 0
      %760 = vperm.xlu0 %759, %v757
      %v761 = vpop.permute.xlu0 %760
      %vm763 = vcmask 31744
      %v765 = vsel %vm763, %v756, 0
      %v768 = vsel %vm471, %v754, 0
      %v771 = vsel %vm471, %v755, 0
      %773 = vmatprep.subr.mxu0 %v771
      %774 = vmatpush1.msra.mxu0 %v768
      %775 = vmatprep.subr.mxu0 0.0
      %776 = vmatpush1.msra.mxu0 0.0
      %777 = vmatprep.subr.mxu0 0.0
      %778 = vmatpush1.msra.mxu0 0.0
      %779 = vmatprep.subr.mxu0 0.0
      %780 = vmatpush1.msra.mxu0 0.0
      %781 = vmatprep.subr.mxu0 0.0
      %782 = vmatpush1.msra.mxu0 0.0
      %783 = vmatprep.subr.mxu0 0.0
      %784 = vmatpush1.msra.mxu0 0.0
      %785 = vmatprep.subr.mxu0 0.0
      %786 = vmatpush1.msra.mxu0 0.0
      %787 = vmatprep.subr.mxu0 0.0
      %788 = vmatpush1.msra.mxu0 0.0
      %789 = vmatprep.subr.mxu0 0.0
      %790 = vmatpush1.msra.mxu0 0.0
      %791 = vmatprep.subr.mxu0 0.0
      %792 = vmatpush1.msra.mxu0 0.0
      %793 = vmatprep.subr.mxu0 0.0
      %794 = vmatpush1.msra.mxu0 0.0
      %795 = vmatprep.subr.mxu0 0.0
      %796 = vmatpush1.msra.mxu0 0.0
      %797 = vmatprep.subr.mxu0 0.0
      %798 = vmatpush1.msra.mxu0 0.0
      %799 = vmatprep.subr.mxu0 0.0
      %800 = vmatpush1.msra.mxu0 0.0
      %801 = vmatprep.subr.mxu0 0.0
      %802 = vmatpush1.msra.mxu0 0.0
      %803 = vmatprep.subr.mxu0 0.0
      %804 = vmatpush1.msra.mxu0 0.0
      %805 = vmatprep.subr.mxu0 0.0
      %806 = vmatpush1.msra.mxu0 0.0
      %807 = vmatprep.subr.mxu0 0.0
      %808 = vmatpush1.msra.mxu0 0.0
      %809 = vmatprep.subr.mxu0 0.0
      %810 = vmatpush1.msra.mxu0 0.0
      %811 = vmatprep.subr.mxu0 0.0
      %812 = vmatpush1.msra.mxu0 0.0
      %813 = vmatprep.subr.mxu0 0.0
      %814 = vmatpush1.msra.mxu0 0.0
      %815 = vmatprep.subr.mxu0 0.0
      %816 = vmatpush1.msra.mxu0 0.0
      %817 = vmatprep.subr.mxu0 0.0
      %818 = vmatpush1.msra.mxu0 0.0
      %819 = vmatprep.subr.mxu0 0.0
      %820 = vmatpush1.msra.mxu0 0.0
      %821 = vmatprep.subr.mxu0 0.0
      %822 = vmatpush1.msra.mxu0 0.0
      %823 = vmatprep.subr.mxu0 0.0
      %824 = vmatpush1.msra.mxu0 0.0
      %825 = vmatprep.subr.mxu0 0.0
      %826 = vmatpush1.msra.mxu0 0.0
      %827 = vmatprep.subr.mxu0 0.0
      %828 = vmatpush1.msra.mxu0 0.0
      %829 = vmatprep.subr.mxu0 0.0
      %830 = vmatpush1.msra.mxu0 0.0
      %831 = vmatprep.subr.mxu0 0.0
      %832 = vmatpush1.msra.mxu0 0.0
      %833 = vmatprep.subr.mxu0 0.0
      %834 = vmatpush1.msra.mxu0 0.0
      %835 = vmatprep.subr.mxu0 0.0
      %836 = vmatpush1.msra.mxu0 0.0
      %837 = vmatprep.mubr.f32.mxu0 0.0
      %838 = vmatmul.mubr.f32.gmra.mrb[0].mxu0 %v765
      %v839 = vpop.f32.mrb[0].mxu0
      %v840 = vadd.f32 %v761, %v839
      %v841 = vpop.f32.mrb[0].mxu0
      %v842 = vadd.f32 %v761, %v841
      %843 = vdwg.mxu0
      %v844 = vadd.f32 %v840, %v332
      %v845 = vadd.f32 %v842, %v334
      %v846 = vmax.f32 %v844, 0.0
      %v847 = vmax.f32 %v845, 0.0
      %v850 = vcombine.low %v846, %v847
      %852 = vst [vmem:[%s278] sm:$0xff] %v850
      %p853 = scmp.lt.s32.totalorder %s18, 1
      %s854 = scalar_select %p853, %s18, 1
      %s855 = smul.addr %s854, 2
      %s856 = smul.addr %s855, 4
      %s857 = scalar_lea.vmem %s7, %s856
      // Predicated region
      $region49: #{eresidual_block.1} parent=47 // pred_check
        %p858 = pneg %p188
      $region50: #{eresidual_block.1} parent=47 // pred_check_branch
        %860 = sbr.rel (%p858) target = $region52
      $region51: #{eresidual_block.1} parent=47 // pred_region
        _
      $region52: #{eresidual_block.1} parent=47 // pred_fallthru
        _
    $region48: #{eresidual_block.1} parent=5 // pred_fallthru
      _
    %p861 = scmp.le.s32.totalorder 2, %s13
    // Predicated region
    $region53: #{eresidual_block.1} parent=5 // pred_check
      %p862 = pneg %p861
    $region54: #{eresidual_block.1} parent=5 // pred_check_branch
      %864 = sbr.rel (%p862) target = $region56
    $region55: #{eresidual_block.1} parent=5 // pred_region
      %s865 = ssub.s32 %s13, 2
      // Predicated region
      $region57: #{eresidual_block.1} parent=55 // pred_check
        %p866 = pneg %p194
      $region58: #{eresidual_block.1} parent=55 // pred_check_branch
        %868 = sbr.rel (%p866) target = $region60
      $region59: #{eresidual_block.1} parent=55 // pred_region
        %p869 = scmp.lt.s32.totalorder %s19, 1
        %s870 = scalar_select %p869, %s19, 1
        %s871 = smul.addr %s870, 2
        %s872 = smul.addr %s871, 4
        %s873 = scalar_lea.vmem %s7, %s872
      $region60: #{eresidual_block.1} parent=55 // pred_fallthru
        _
    $region56: #{eresidual_block.1} parent=5 // pred_fallthru
      _
  $region6: #{eresidual_block.1} parent=0 // loop_footer
    %s17 = sadd.s32 1, %s13
  $region7: #{eresidual_block.1} parent=0 // loop_footer_branch
    %12 = sbr.rel target = $region3
  $region8: #{eresidual_block.1} parent=0 // loop_exit
    _

</llo_original>
